<compile_context>
chip_gen: v7x
topology: tpu7x:2x2x1
jax: 0.10.0
libtpu: 0.0.40
codegen_flags: <defaults>
</compile_context>

<pallas_src>
import functools
import types

import jax
import jax.numpy as jnp
from jax.experimental import pallas as pl
from jax.experimental.pallas import tpu as pltpu

_OUT_W = 128  # lane-dense width of the scalar-output vectors


# --------------------------------------------------------------------------
# helpers (trace-time)
# --------------------------------------------------------------------------
def _static_pow(x, p):
    """x ** p with p known at trace time; integer p stays on the VPU."""
    if float(p).is_integer():
        pi = int(p)
        if pi == 0:
            return jnp.ones_like(x)
        if pi == 1:
            return x
        if pi == 2:
            return x * x
        return x ** pi                       # lax.integer_pow -> multiplies
    # float exponent: guard log(0) (p_t == 1 case)
    return jnp.exp(p * jnp.log(jnp.maximum(x, 1e-12)))


def _bce_with_logits(x, t):
    # numerically stable binary_cross_entropy_with_logits, reduction='none'
    return jnp.maximum(x, 0.0) - x * t + jnp.log1p(jnp.exp(-jnp.abs(x)))


# --------------------------------------------------------------------------
# kernel 1 (fused): focal-loss sum + cardinality error + counter BCE
# grid = (B,): one batch item per grid step, "parallel" semantics.
# outputs per-batch partials in a lane-dense [1,1,128] block:
#   lane 0 = focal sum, lane 1 = |card_pred - tgt_len|, lane 2 = counter sum
# --------------------------------------------------------------------------
def _cls_fused_kernel(logits_ref, tclass_ref, tgtlen_ref, count_ref,
                      ctgt_ref, weight_ref, out_ref,
                      *, alpha, gamma, beta, gau_mask):
    # ----- focal loss (one-hot built in-kernel) ---------------------------
    x = logits_ref[0].astype(jnp.float32)                  # [Q, C]
    Q, C = x.shape
    tcls = tclass_ref[0]                                   # [Q, 1] int32
    cls_iota = jax.lax.broadcasted_iota(jnp.int32, (Q, C), 1)
    t = (cls_iota == tcls).astype(jnp.float32)             # [Q, C] one-hot

    e = jnp.exp(-jnp.abs(x))                               # single EUP exp
    inv1pe = pl.reciprocal(1.0 + e, approx=True)
    prob = jnp.where(x >= 0.0, inv1pe, e * inv1pe)         # sigmoid(x)
    ce = jnp.maximum(x, 0.0) - x * t + jnp.log1p(e)        # stable BCE
    p_t = prob * t + (1.0 - prob) * (1.0 - t)
    loss = ce * _static_pow(1.0 - p_t, gamma)
    if alpha >= 0:
        loss = (alpha * t + (1.0 - alpha) * (1.0 - t)) * loss
    focal_b = jnp.reshape(jnp.sum(loss), (1, 1))

    # ----- cardinality error (argmax != C-1  <=>  max(x[:C-1]) >= x[C-1]) -
    m_rest = jnp.max(jnp.where(cls_iota < C - 1, x, -jnp.inf),
                     axis=1, keepdims=True)                # [Q, 1]
    m_last = jnp.max(jnp.where(cls_iota == C - 1, x, -jnp.inf),
                     axis=1, keepdims=True)                # [Q, 1]
    non_empty = (m_rest >= m_last).astype(jnp.float32)
    card_pred = jnp.sum(non_empty)
    tgt_len = jnp.sum(tgtlen_ref[0])
    card_b = jnp.reshape(jnp.abs(card_pred - tgt_len), (1, 1))

    # ----- counter loss (gaussian-masked BCE), one-hot built in-kernel ----
    xc = count_ref[0].astype(jnp.float32)                  # [1, L]
    L = xc.shape[1]
    w = weight_ref[...].astype(jnp.float32)                # [1, L]
    ctgt = ctgt_ref[0]                                     # [1, 1] int32
    j_i = jax.lax.broadcasted_iota(jnp.int32, (1, L), 1)
    tc_onehot = (j_i == ctgt).astype(jnp.float32)          # [1, L]
    jf = j_i.astype(jnp.float32)
    ind = ctgt.astype(jnp.float32)                         # [1, 1]
    sigma = 2.0
    gmask = jnp.exp(-((jf - ind) ** 2) / (2.0 * sigma * sigma))
    closs = _bce_with_logits(xc, tc_onehot) * (1.0 - w)
    if gau_mask:
        coef = tc_onehot + _static_pow(1.0 - gmask, beta) * (1.0 - tc_onehot)
    else:
        coef = tc_onehot + (1.0 - tc_onehot)
    counter_b = jnp.reshape(jnp.sum(closs * coef), (1, 1))

    # ----- lane-dense scalar output ---------------------------------------
    lane = jax.lax.broadcasted_iota(jnp.int32, (1, _OUT_W), 1)
    out = jnp.zeros((1, _OUT_W), jnp.float32)
    out = jnp.where(lane == 0, focal_b, out)
    out = jnp.where(lane == 1, card_b, out)
    out = jnp.where(lane == 2, counter_b, out)
    out_ref[...] = jnp.reshape(out, (1, 1, _OUT_W))


def classification_losses(pred_logits, target_classes, tgt_lengths,
                          pred_count, counter_target, weight_row,
                          *, alpha, gamma, beta, gau_mask):
    """Fused focal / cardinality / counter losses.  Returns 3 scalars."""
    B, Q, C = pred_logits.shape
    L = pred_count.shape[1]
    kernel = functools.partial(_cls_fused_kernel, alpha=alpha, gamma=gamma,
                               beta=beta, gau_mask=gau_mask)
    partials = pl.pallas_call(
        kernel,
        grid=(B,),
        in_specs=[
            pl.BlockSpec((1, Q, C), lambda b: (b, 0, 0)),   # logits
            pl.BlockSpec((1, Q, 1), lambda b: (b, 0, 0)),   # target classes
            pl.BlockSpec((1, 1, 1), lambda b: (b, 0, 0)),   # tgt lengths
            pl.BlockSpec((1, 1, L), lambda b: (b, 0, 0)),   # pred_count
            pl.BlockSpec((1, 1, 1), lambda b: (b, 0, 0)),   # counter target
            pl.BlockSpec((1, L), lambda b: (0, 0)),         # counter weight
        ],
        out_specs=pl.BlockSpec((1, 1, _OUT_W), lambda b: (b, 0, 0)),
        out_shape=jax.ShapeDtypeStruct((B, 1, _OUT_W), jnp.float32),
        compiler_params=pltpu.CompilerParams(
            dimension_semantics=("parallel",),      # megacore on v7x
            vmem_limit_bytes=32 * 1024 * 1024),     # stays under v7x 64MiB VMEM
    )(pred_logits.astype(jnp.float32),
      target_classes.astype(jnp.int32)[..., None],
      tgt_lengths.astype(jnp.float32).reshape(B, 1, 1),
      pred_count.astype(jnp.float32).reshape(B, 1, L),
      counter_target.astype(jnp.int32).reshape(B, 1, 1),
      weight_row.astype(jnp.float32).reshape(1, L))

    focal_sum = jnp.sum(partials[:, 0, 0])
    card_err = jnp.mean(partials[:, 0, 1])
    counter = jnp.sum(partials[:, 0, 2]) / (B * L)
    return focal_sum, card_err, counter


# --------------------------------------------------------------------------
# kernel 2: box losses (L1 sum, paired GIoU sum, segment-normalized self-IoU)
# single packed input [8, N] (rows: src_c, src_l, tgt_c, tgt_l, seg, norm, 0, 0)
# output: lane-dense (1, 128): [0]=l1 sum, [1]=sum(1-giou), [2]=self-IoU split
# --------------------------------------------------------------------------
def _box_kernel(data_ref, out_ref):
    d = data_ref[...].astype(jnp.float32)                  # [8, N]
    N = d.shape[1]
    sc, sl = d[0:1, :], d[1:2, :]
    tc, tl = d[2:3, :], d[3:4, :]
    seg, norm = d[4:5, :], d[5:6, :]

    # L1 regression loss (sum over both coords, all pairs)
    l1_sum = jnp.reshape(jnp.sum(jnp.abs(sc - tc) + jnp.abs(sl - tl)), (1, 1))

    # (center, length) -> (x1, x2), row form [1, N]
    sx1, sx2 = sc - 0.5 * sl, sc + 0.5 * sl
    tx1, tx2 = tc - 0.5 * tl, tc + 0.5 * tl

    # paired GIoU (diagonal of generalized_box_iou)
    inter = jnp.maximum(jnp.minimum(sx2, tx2) - jnp.maximum(sx1, tx1), 0.0)
    area_s, area_t = sx2 - sx1, tx2 - tx1
    union = area_s + area_t - inter
    iou = inter / union
    enclose = jnp.maximum(jnp.maximum(sx2, tx2) - jnp.minimum(sx1, tx1), 0.0)
    giou = iou - (enclose - union) / enclose
    giou_loss = jnp.reshape(jnp.sum(1.0 - giou), (1, 1))

    # self-IoU (src vs src), strictly upper triangular, per-segment normalized
    r = jax.lax.broadcasted_iota(jnp.int32, (N, N), 0)
    c = jax.lax.broadcasted_iota(jnp.int32, (N, N), 1)
    eye = r == c

    def to_col(row):  # [1, N] -> [N, 1] without an explicit transpose
        return jnp.sum(jnp.where(eye, jnp.broadcast_to(row, (N, N)), 0.0),
                       axis=1, keepdims=True)

    sx1c, sx2c, segc = to_col(sx1), to_col(sx2), to_col(seg)
    inter_m = jnp.maximum(jnp.minimum(sx2c, sx2) - jnp.maximum(sx1c, sx1), 0.0)
    union_m = (sx2c - sx1c) + area_s - inter_m
    iou_m = inter_m / union_m                              # [N, N]
    pairmask = (c > r) & (segc == seg)                     # same-segment, j>i
    self_iou = jnp.reshape(
        jnp.sum(jnp.where(pairmask, iou_m * jnp.broadcast_to(norm, (N, N)),
                          0.0)),
        (1, 1))

    lane = jax.lax.broadcasted_iota(jnp.int32, (1, _OUT_W), 1)
    out = jnp.zeros((1, _OUT_W), jnp.float32)
    out = jnp.where(lane == 0, l1_sum, out)
    out = jnp.where(lane == 1, giou_loss, out)
    out = jnp.where(lane == 2, self_iou, out)
    out_ref[...] = out


def box_losses(src_boxes, target_boxes, seg_ids, seg_norm):
    N = src_boxes.shape[0]
    zeros = jnp.zeros((N,), jnp.float32)
    data = jnp.stack(
        [src_boxes[:, 0], src_boxes[:, 1],
         target_boxes[:, 0], target_boxes[:, 1],
         seg_ids, seg_norm, zeros, zeros], axis=0).astype(jnp.float32)  # [8,N]
    scalars = pl.pallas_call(
        _box_kernel,
        grid=(1,),
        in_specs=[pl.BlockSpec((8, N), lambda i: (0, 0))],
        out_specs=pl.BlockSpec((1, _OUT_W), lambda i: (0, 0)),
        out_shape=jax.ShapeDtypeStruct((1, _OUT_W), jnp.float32),
        compiler_params=pltpu.CompilerParams(
            vmem_limit_bytes=32 * 1024 * 1024),
    )(data)
    return scalars[0, 0], scalars[0, 1], scalars[0, 2]


# --------------------------------------------------------------------------
# SetCriterion (forward-pass only, eval-mode semantics)
# --------------------------------------------------------------------------
_COUNTER_CLASS_RATE = [
    0.0, 0.0, 0.193425917, 0.412129084, 0.188929963, 0.0781296833,
    0.0509541413, 0.0312718553, 0.018483365, 0.0083924468, 0.00659406534,
    0.00449595364, 0.00219802178, 0.00179838146, 0.000599460486,
    0.000499550405, 0.000499550405, 0.000199820162, 0.000299730243,
    0.000399640324, 0.000299730243, 0.0, 0.000199820162, 0.0, 0.0, 0.0,
    9.99100809e-05, 9.99100809e-05,
]


class SetCriterionPallas:
    def __init__(self, num_classes, weight_dict, losses,
                 focal_alpha=0.25, focal_gamma=2, opt=None):
        self.num_classes = num_classes
        self.weight_dict = weight_dict
        self.losses = losses
        self.focal_alpha = focal_alpha
        self.focal_gamma = focal_gamma
        self.opt = opt
        self.counter_class_rate = jnp.array(_COUNTER_CLASS_RATE, jnp.float32)

    # --- index plumbing (plain JAX glue) -------------------------------
    @staticmethod
    def _get_src_permutation_idx(indices):
        batch_idx = jnp.concatenate(
            [jnp.full_like(src, i) for i, (src, _) in enumerate(indices)])
        src_idx = jnp.concatenate([src for src, _ in indices])
        return batch_idx, src_idx

    # --- box losses ------------------------------------------------------
    def loss_boxes(self, outputs, targets, indices, num_boxes):
        indices, _many2one = indices
        batch_idx, src_idx = self._get_src_permutation_idx(indices)
        src_boxes = outputs['pred_boxes'][batch_idx, src_idx]        # [N, 2]
        target_boxes = jnp.concatenate(
            [t['boxes'][i] for t, (_, i) in zip(targets, indices)], axis=0)
        sizes = [int(len(v[0])) for v in indices]

        seg_ids = jnp.concatenate(
            [jnp.full((n,), float(i), jnp.float32)
             for i, n in enumerate(sizes)])
        # 1/(0.5*n*(n-1)) per segment; 0 for degenerate n<=1 segments (the
        # torch reference would produce NaN there and hit its breakpoint).
        seg_norm = jnp.concatenate(
            [jnp.full((n,), (1.0 / (0.5 * n * (n - 1)) if n > 1 else 0.0),
                      jnp.float32) for n in sizes])

        l1_sum, giou_loss_sum, self_iou_split = box_losses(
            src_boxes, target_boxes, seg_ids, seg_norm)
        losses = {
            'loss_bbox': l1_sum / num_boxes,
            'loss_giou': giou_loss_sum / num_boxes,
        }
        if sizes == [1]:
            # reference returns the (1,1) strictly-upper-triangular self-IoU
            # matrix, which is identically zero.
            losses['loss_self_iou'] = jnp.zeros((1, 1), jnp.float32)
        else:
            losses['loss_self_iou'] = self_iou_split
        return losses

    # --- forward ---------------------------------------------------------
    def forward(self, outputs, targets, matched_indices):
        # TODO(synk): Hungarian matcher has no Pallas equivalent; indices are
        # supplied externally (deterministic) instead of computed here.
        last_indices = (matched_indices, None)
        num_boxes = float(max(sum(len(t['labels']) for t in targets), 1))

        losses = {}
        need_labels = 'labels' in self.losses
        need_card = 'cardinality' in self.losses

        if need_labels or need_card:
            src_logits = outputs['pred_logits']                  # [B, Q, C]
            B, Q, C = src_logits.shape
            batch_idx, src_idx = self._get_src_permutation_idx(matched_indices)
            target_classes_o = jnp.concatenate(
                [t['labels'][J] for t, (_, J) in zip(targets, matched_indices)])
            target_classes = jnp.full((B, Q), self.num_classes, jnp.int32)
            target_classes = target_classes.at[batch_idx, src_idx].set(
                target_classes_o)

            pred_count = outputs['pred_count']                   # [B, L]
            L = pred_count.shape[1]
            max_length = L - 1
            counter_target = jnp.array(
                [min(len(t['boxes']), max_length) for t in targets], jnp.int32)
            weight = self.counter_class_rate[:max_length + 1].reshape(1, -1)
            tgt_lengths = jnp.array([len(t['labels']) for t in targets],
                                    jnp.float32)

            focal_sum, card_err, counter = classification_losses(
                src_logits, target_classes, tgt_lengths, pred_count,
                counter_target, weight,
                alpha=self.focal_alpha, gamma=self.focal_gamma,
                beta=self.opt.lloss_beta,
                gau_mask=bool(self.opt.lloss_gau_mask))

            if need_labels:
                # sigmoid_focal_loss = sum/Q/num_boxes, then *Q in loss_labels
                losses['loss_ce'] = focal_sum / num_boxes
                losses['loss_counter'] = counter
            if need_card:
                losses['cardinality_error'] = card_err

        if 'boxes' in self.losses:
            losses.update(self.loss_boxes(outputs, targets, last_indices,
                                          num_boxes))
        return losses, last_indices


# --------------------------------------------------------------------------
# main
# --------------------------------------------------------------------------
if __name__ == "__main__":
    key = jax.random.PRNGKey(0)
    B, Q, C, L, NB = 2, 8, 4, 8, 3   # batch, queries, classes, count-bins, gt/b

    k1, k2, k3, k4, k5, k6 = jax.random.split(key, 6)
    pred_logits = jax.random.normal(k1, (B, Q, C), jnp.float32)
    centers = jax.random.uniform(k2, (B, Q, 1), minval=0.2, maxval=0.8)
    lengths = jax.random.uniform(k3, (B, Q, 1), minval=0.1, maxval=0.4)
    pred_boxes = jnp.concatenate([centers, lengths], axis=-1)       # [B,Q,2]
    pred_count = jax.random.normal(k4, (B, L), jnp.float32)

    targets = []
    for b in range(B):
        kb1, kb2, kb3 = jax.random.split(jax.random.fold_in(k5, b), 3)
        labels = jax.random.randint(kb1, (NB,), 0, C, jnp.int32)
        c = jax.random.uniform(kb2, (NB, 1), minval=0.2, maxval=0.8)
        d = jax.random.uniform(kb3, (NB, 1), minval=0.1, maxval=0.4)
        targets.append({'labels': labels,
                        'boxes': jnp.concatenate([c, d], axis=-1)})

    # deterministic "matched" indices (query idx, target idx) per batch item
    matched_indices = [
        (jnp.array([0, 2, 4], jnp.int32), jnp.array([0, 1, 2], jnp.int32)),
        (jnp.array([1, 3, 5], jnp.int32), jnp.array([2, 0, 1], jnp.int32)),
    ]

    opt = types.SimpleNamespace(
        lloss_gau_mask=1, lloss_beta=1,
        pseudo_box_aug=False, refine_pseudo_box=False, use_pseudo_box=False,
        visual_feature_folder=['anet'], pseudo_box_aug_mode='random')

    criterion = SetCriterionPallas(
        num_classes=C,
        weight_dict={'loss_ce': 1.0, 'loss_bbox': 5.0, 'loss_giou': 2.0,
                     'loss_counter': 1.0, 'loss_self_iou': 1.0},
        losses=['labels', 'cardinality', 'boxes'],
        focal_alpha=0.25, focal_gamma=2, opt=opt)

    outputs = {'pred_logits': pred_logits,
               'pred_boxes': pred_boxes,
               'pred_count': pred_count}

    losses, _ = criterion.forward(outputs, targets, matched_indices)
    ok = True
    for k in sorted(losses):
        v = jax.block_until_ready(losses[k])
        if not bool(jnp.all(jnp.isfinite(v))):
            ok = False
            print(f"non-finite loss: {k}")
    if ok:
        print("KERNEL_OK")
</pallas_src>

<mosaic_0001>
module attributes {stable_mosaic.version = 11 : i64} {
  func.func @_cls_fused_kernel(%arg0: i32, %arg1: memref<1x8x4xf32, #tpu.memory_space<vmem>>, %arg2: memref<1x8x1xi32, #tpu.memory_space<vmem>>, %arg3: memref<1x1x1xf32, #tpu.memory_space<vmem>>, %arg4: memref<1x1x8xf32, #tpu.memory_space<vmem>>, %arg5: memref<1x1x1xi32, #tpu.memory_space<vmem>>, %arg6: memref<1x8xf32, #tpu.memory_space<vmem>>, %arg7: memref<1x1x128xf32, #tpu.memory_space<vmem>>) attributes {dimension_semantics = [#tpu.dimension_semantics<parallel>], iteration_bounds = array<i64: 2>, scalar_prefetch = 0 : i64, scratch_operands = 0 : i64, tpu.core_type = #tpu.core_type<tc>, window_params = [{transform_indices = @transform_0, window_bounds = array<i64: 1, 8, 4>}, {transform_indices = @transform_1, window_bounds = array<i64: 1, 8, 1>}, {transform_indices = @transform_2, window_bounds = array<i64: 1, 1, 1>}, {transform_indices = @transform_3, window_bounds = array<i64: 1, 1, 8>}, {transform_indices = @transform_4, window_bounds = array<i64: 1, 1, 1>}, {pipeline_mode = #tpu.pipeline_mode<synchronous>, transform_indices = @transform_5, window_bounds = array<i64: 1, 8>}, {transform_indices = @transform_6, window_bounds = array<i64: 1, 1, 128>}]} {
    %c0 = arith.constant 0 : index
    %c0_0 = arith.constant 0 : index
    %c0_1 = arith.constant 0 : index
    %0 = vector.load %arg1[%c0, %c0_0, %c0_1] : memref<1x8x4xf32, #tpu.memory_space<vmem>>, vector<1x8x4xf32>
    %1 = vector.shape_cast %0 : vector<1x8x4xf32> to vector<8x4xf32>
    %c0_2 = arith.constant 0 : index
    %c0_3 = arith.constant 0 : index
    %c0_4 = arith.constant 0 : index
    %2 = vector.load %arg2[%c0_2, %c0_3, %c0_4] : memref<1x8x1xi32, #tpu.memory_space<vmem>>, vector<1x8x1xi32>
    %3 = vector.shape_cast %2 : vector<1x8x1xi32> to vector<8x1xi32>
    %4 = tpu.iota {dimensions = array<i32: 1>} : vector<8x4xi32>
    %5 = vector.broadcast %3 : vector<8x1xi32> to vector<8x4xi32>
    %6 = arith.cmpi eq, %4, %5 : vector<8x4xi32>
    %7 = arith.extui %6 : vector<8x4xi1> to vector<8x4xi32>
    %8 = arith.sitofp %7 : vector<8x4xi32> to vector<8x4xf32>
    %9 = math.absf %1 : vector<8x4xf32>
    %cst = arith.constant 0.000000e+00 : f32
    %10 = vector.broadcast %cst : f32 to vector<8x4xf32>
    %11 = arith.subf %10, %9 : vector<8x4xf32>
    %12 = math.exp %11 : vector<8x4xf32>
    %cst_5 = arith.constant 1.000000e+00 : f32
    %13 = vector.broadcast %cst_5 : f32 to vector<8x4xf32>
    %14 = arith.addf %13, %12 : vector<8x4xf32>
    %15 = tpu.reciprocal %14 {approx = true} : vector<8x4xf32> -> vector<8x4xf32>
    %cst_6 = arith.constant 0.000000e+00 : f32
    %16 = vector.broadcast %cst_6 : f32 to vector<8x4xf32>
    %17 = arith.cmpf oge, %1, %16 : vector<8x4xf32>
    %18 = arith.mulf %12, %15 : vector<8x4xf32>
    %19 = arith.select %17, %15, %18 : vector<8x4xi1>, vector<8x4xf32>
    %cst_7 = arith.constant 0.000000e+00 : f32
    %20 = vector.broadcast %cst_7 : f32 to vector<8x4xf32>
    %21 = arith.maximumf %1, %20 : vector<8x4xf32>
    %22 = arith.mulf %1, %8 : vector<8x4xf32>
    %23 = arith.subf %21, %22 : vector<8x4xf32>
    %24 = math.log1p %12 : vector<8x4xf32>
    %25 = arith.addf %23, %24 : vector<8x4xf32>
    %26 = arith.mulf %19, %8 : vector<8x4xf32>
    %cst_8 = arith.constant 1.000000e+00 : f32
    %27 = vector.broadcast %cst_8 : f32 to vector<8x4xf32>
    %28 = arith.subf %27, %19 : vector<8x4xf32>
    %cst_9 = arith.constant 1.000000e+00 : f32
    %29 = vector.broadcast %cst_9 : f32 to vector<8x4xf32>
    %30 = arith.subf %29, %8 : vector<8x4xf32>
    %31 = arith.mulf %28, %30 : vector<8x4xf32>
    %32 = arith.addf %26, %31 : vector<8x4xf32>
    %cst_10 = arith.constant 1.000000e+00 : f32
    %33 = vector.broadcast %cst_10 : f32 to vector<8x4xf32>
    %34 = arith.subf %33, %32 : vector<8x4xf32>
    %35 = arith.mulf %34, %34 : vector<8x4xf32>
    %36 = arith.mulf %25, %35 : vector<8x4xf32>
    %cst_11 = arith.constant 2.500000e-01 : f32
    %37 = vector.broadcast %cst_11 : f32 to vector<8x4xf32>
    %38 = arith.mulf %37, %8 : vector<8x4xf32>
    %cst_12 = arith.constant 1.000000e+00 : f32
    %39 = vector.broadcast %cst_12 : f32 to vector<8x4xf32>
    %40 = arith.subf %39, %8 : vector<8x4xf32>
    %cst_13 = arith.constant 7.500000e-01 : f32
    %41 = vector.broadcast %cst_13 : f32 to vector<8x4xf32>
    %42 = arith.mulf %41, %40 : vector<8x4xf32>
    %43 = arith.addf %38, %42 : vector<8x4xf32>
    %44 = arith.mulf %43, %36 : vector<8x4xf32>
    %45 = vector.shape_cast %44 : vector<8x4xf32> to vector<1x8x4xf32>
    %cst_14 = arith.constant dense<0.000000e+00> : vector<1xf32>
    %46 = vector.multi_reduction <add>, %45, %cst_14 [1, 2] : vector<1x8x4xf32> to vector<1xf32>
    %47 = vector.shape_cast %46 : vector<1xf32> to vector<1x1x1xf32>
    %48 = vector.extract %47[0, 0, 0] : f32 from vector<1x1x1xf32>
    %49 = vector.broadcast %48 : f32 to vector<1x1xf32>
    %c3_i32 = arith.constant 3 : i32
    %50 = vector.broadcast %c3_i32 : i32 to vector<8x4xi32>
    %51 = arith.cmpi slt, %4, %50 : vector<8x4xi32>
    %cst_15 = arith.constant 0xFF800000 : f32
    %52 = vector.broadcast %cst_15 : f32 to vector<8x4xf32>
    %53 = arith.select %51, %1, %52 : vector<8x4xi1>, vector<8x4xf32>
    %cst_16 = arith.constant dense<0xFF800000> : vector<8xf32>
    %54 = vector.multi_reduction <maximumf>, %53, %cst_16 [1] : vector<8x4xf32> to vector<8xf32>
    %55 = vector.shape_cast %54 : vector<8xf32> to vector<8x1xf32>
    %c3_i32_17 = arith.constant 3 : i32
    %56 = vector.broadcast %c3_i32_17 : i32 to vector<8x4xi32>
    %57 = arith.cmpi eq, %4, %56 : vector<8x4xi32>
    %cst_18 = arith.constant 0xFF800000 : f32
    %58 = vector.broadcast %cst_18 : f32 to vector<8x4xf32>
    %59 = arith.select %57, %1, %58 : vector<8x4xi1>, vector<8x4xf32>
    %cst_19 = arith.constant dense<0xFF800000> : vector<8xf32>
    %60 = vector.multi_reduction <maximumf>, %59, %cst_19 [1] : vector<8x4xf32> to vector<8xf32>
    %61 = vector.shape_cast %60 : vector<8xf32> to vector<8x1xf32>
    %62 = arith.cmpf oge, %55, %61 : vector<8x1xf32>
    %63 = arith.extui %62 : vector<8x1xi1> to vector<8x1xi32>
    %64 = arith.sitofp %63 : vector<8x1xi32> to vector<8x1xf32>
    %65 = vector.shape_cast %64 : vector<8x1xf32> to vector<1x8x1xf32>
    %cst_20 = arith.constant dense<0.000000e+00> : vector<1xf32>
    %66 = vector.multi_reduction <add>, %65, %cst_20 [1, 2] : vector<1x8x1xf32> to vector<1xf32>
    %67 = vector.shape_cast %66 : vector<1xf32> to vector<1x1x1xf32>
    %68 = vector.extract %67[0, 0, 0] : f32 from vector<1x1x1xf32>
    %c0_21 = arith.constant 0 : index
    %c0_22 = arith.constant 0 : index
    %c0_23 = arith.constant 0 : index
    %69 = vector.load %arg3[%c0_21, %c0_22, %c0_23] : memref<1x1x1xf32, #tpu.memory_space<vmem>>, vector<1x1x1xf32>
    %70 = vector.shape_cast %69 : vector<1x1x1xf32> to vector<1x1xf32>
    %71 = vector.shape_cast %70 : vector<1x1xf32> to vector<1x1x1xf32>
    %cst_24 = arith.constant dense<0.000000e+00> : vector<1xf32>
    %72 = vector.multi_reduction <add>, %71, %cst_24 [1, 2] : vector<1x1x1xf32> to vector<1xf32>
    %73 = vector.shape_cast %72 : vector<1xf32> to vector<1x1x1xf32>
    %74 = vector.extract %73[0, 0, 0] : f32 from vector<1x1x1xf32>
    %75 = arith.subf %68, %74 : f32
    %76 = math.absf %75 : f32
    %77 = vector.broadcast %76 : f32 to vector<1x1xf32>
    %c0_25 = arith.constant 0 : index
    %c0_26 = arith.constant 0 : index
    %c0_27 = arith.constant 0 : index
    %78 = vector.load %arg4[%c0_25, %c0_26, %c0_27] : memref<1x1x8xf32, #tpu.memory_space<vmem>>, vector<1x1x8xf32>
    %79 = vector.shape_cast %78 : vector<1x1x8xf32> to vector<1x8xf32>
    %c0_28 = arith.constant 0 : index
    %c0_29 = arith.constant 0 : index
    %80 = vector.load %arg6[%c0_28, %c0_29] : memref<1x8xf32, #tpu.memory_space<vmem>>, vector<1x8xf32>
    %c0_30 = arith.constant 0 : index
    %c0_31 = arith.constant 0 : index
    %c0_32 = arith.constant 0 : index
    %81 = vector.load %arg5[%c0_30, %c0_31, %c0_32] : memref<1x1x1xi32, #tpu.memory_space<vmem>>, vector<1x1x1xi32>
    %82 = vector.shape_cast %81 : vector<1x1x1xi32> to vector<1x1xi32>
    %83 = tpu.iota {dimensions = array<i32: 1>} : vector<1x8xi32>
    %84 = vector.broadcast %82 : vector<1x1xi32> to vector<1x8xi32>
    %85 = arith.cmpi eq, %83, %84 : vector<1x8xi32>
    %86 = arith.extui %85 : vector<1x8xi1> to vector<1x8xi32>
    %87 = arith.sitofp %86 : vector<1x8xi32> to vector<1x8xf32>
    %88 = arith.sitofp %83 : vector<1x8xi32> to vector<1x8xf32>
    %89 = arith.sitofp %82 : vector<1x1xi32> to vector<1x1xf32>
    %90 = vector.broadcast %89 : vector<1x1xf32> to vector<1x8xf32>
    %91 = arith.subf %88, %90 : vector<1x8xf32>
    %92 = arith.mulf %91, %91 : vector<1x8xf32>
    %cst_33 = arith.constant 0.000000e+00 : f32
    %93 = vector.broadcast %cst_33 : f32 to vector<1x8xf32>
    %94 = arith.subf %93, %92 : vector<1x8xf32>
    %cst_34 = arith.constant 8.000000e+00 : f32
    %95 = vector.broadcast %cst_34 : f32 to vector<1x8xf32>
    %96 = arith.divf %94, %95 : vector<1x8xf32>
    %97 = math.exp %96 : vector<1x8xf32>
    %cst_35 = arith.constant 0.000000e+00 : f32
    %98 = vector.broadcast %cst_35 : f32 to vector<1x8xf32>
    %99 = arith.maximumf %79, %98 : vector<1x8xf32>
    %100 = arith.mulf %79, %87 : vector<1x8xf32>
    %101 = arith.subf %99, %100 : vector<1x8xf32>
    %102 = math.absf %79 : vector<1x8xf32>
    %cst_36 = arith.constant 0.000000e+00 : f32
    %103 = vector.broadcast %cst_36 : f32 to vector<1x8xf32>
    %104 = arith.subf %103, %102 : vector<1x8xf32>
    %105 = math.exp %104 : vector<1x8xf32>
    %106 = math.log1p %105 : vector<1x8xf32>
    %107 = arith.addf %101, %106 : vector<1x8xf32>
    %cst_37 = arith.constant 1.000000e+00 : f32
    %108 = vector.broadcast %cst_37 : f32 to vector<1x8xf32>
    %109 = arith.subf %108, %80 : vector<1x8xf32>
    %110 = arith.mulf %107, %109 : vector<1x8xf32>
    %cst_38 = arith.constant 1.000000e+00 : f32
    %111 = vector.broadcast %cst_38 : f32 to vector<1x8xf32>
    %112 = arith.subf %111, %97 : vector<1x8xf32>
    %cst_39 = arith.constant 1.000000e+00 : f32
    %113 = vector.broadcast %cst_39 : f32 to vector<1x8xf32>
    %114 = arith.subf %113, %87 : vector<1x8xf32>
    %115 = arith.mulf %112, %114 : vector<1x8xf32>
    %116 = arith.addf %87, %115 : vector<1x8xf32>
    %117 = arith.mulf %110, %116 : vector<1x8xf32>
    %118 = vector.shape_cast %117 : vector<1x8xf32> to vector<1x1x8xf32>
    %cst_40 = arith.constant dense<0.000000e+00> : vector<1xf32>
    %119 = vector.multi_reduction <add>, %118, %cst_40 [1, 2] : vector<1x1x8xf32> to vector<1xf32>
    %120 = vector.shape_cast %119 : vector<1xf32> to vector<1x1x1xf32>
    %121 = vector.extract %120[0, 0, 0] : f32 from vector<1x1x1xf32>
    %122 = vector.broadcast %121 : f32 to vector<1x1xf32>
    %123 = tpu.iota {dimensions = array<i32: 1>} : vector<1x128xi32>
    %cst_41 = arith.constant 0.000000e+00 : f32
    %124 = vector.broadcast %cst_41 : f32 to vector<1x128xf32>
    %c0_i32 = arith.constant 0 : i32
    %125 = vector.broadcast %c0_i32 : i32 to vector<1x128xi32>
    %126 = arith.cmpi eq, %123, %125 : vector<1x128xi32>
    %127 = vector.shape_cast %49 : vector<1x1xf32> to vector<1x1xf32>
    %128 = vector.broadcast %127 : vector<1x1xf32> to vector<1x128xf32>
    %129 = arith.select %126, %128, %124 : vector<1x128xi1>, vector<1x128xf32>
    %c1_i32 = arith.constant 1 : i32
    %130 = vector.broadcast %c1_i32 : i32 to vector<1x128xi32>
    %131 = arith.cmpi eq, %123, %130 : vector<1x128xi32>
    %132 = vector.shape_cast %77 : vector<1x1xf32> to vector<1x1xf32>
    %133 = vector.broadcast %132 : vector<1x1xf32> to vector<1x128xf32>
    %134 = arith.select %131, %133, %129 : vector<1x128xi1>, vector<1x128xf32>
    %c2_i32 = arith.constant 2 : i32
    %135 = vector.broadcast %c2_i32 : i32 to vector<1x128xi32>
    %136 = arith.cmpi eq, %123, %135 : vector<1x128xi32>
    %137 = vector.shape_cast %122 : vector<1x1xf32> to vector<1x1xf32>
    %138 = vector.broadcast %137 : vector<1x1xf32> to vector<1x128xf32>
    %139 = arith.select %136, %138, %134 : vector<1x128xi1>, vector<1x128xf32>
    %140 = vector.shape_cast %139 : vector<1x128xf32> to vector<1x1x128xf32>
    %c0_42 = arith.constant 0 : index
    %c0_43 = arith.constant 0 : index
    %c0_44 = arith.constant 0 : index
    %141 = vector.load %arg7[%c0_42, %c0_43, %c0_44] : memref<1x1x128xf32, #tpu.memory_space<vmem>>, vector<1x1x128xf32>
    tpu.vector_store %arg7[%c0_42, %c0_43, %c0_44], %140 {strides = array<i32>} : memref<1x1x128xf32, #tpu.memory_space<vmem>>, vector<1x1x128xf32>,
    return
  }
  func.func @transform_0(%arg0: i32) -> (i32, i32, i32) {
    %c0_i32 = arith.constant 0 : i32
    %c0_i32_0 = arith.constant 0 : i32
    %c0_i32_1 = arith.constant 0 : i32
    return %arg0, %c0_i32, %c0_i32_0 : i32, i32, i32
  }
  func.func @transform_1(%arg0: i32) -> (i32, i32, i32) {
    %c0_i32 = arith.constant 0 : i32
    %c0_i32_0 = arith.constant 0 : i32
    %c0_i32_1 = arith.constant 0 : i32
    return %arg0, %c0_i32, %c0_i32_0 : i32, i32, i32
  }
  func.func @transform_2(%arg0: i32) -> (i32, i32, i32) {
    %c0_i32 = arith.constant 0 : i32
    %c0_i32_0 = arith.constant 0 : i32
    %c0_i32_1 = arith.constant 0 : i32
    return %arg0, %c0_i32, %c0_i32_0 : i32, i32, i32
  }
  func.func @transform_3(%arg0: i32) -> (i32, i32, i32) {
    %c0_i32 = arith.constant 0 : i32
    %c0_i32_0 = arith.constant 0 : i32
    %c0_i32_1 = arith.constant 0 : i32
    return %arg0, %c0_i32, %c0_i32_0 : i32, i32, i32
  }
  func.func @transform_4(%arg0: i32) -> (i32, i32, i32) {
    %c0_i32 = arith.constant 0 : i32
    %c0_i32_0 = arith.constant 0 : i32
    %c0_i32_1 = arith.constant 0 : i32
    return %arg0, %c0_i32, %c0_i32_0 : i32, i32, i32
  }
  func.func @transform_5(%arg0: i32) -> (i32, i32) {
    %c0_i32 = arith.constant 0 : i32
    %c0_i32_0 = arith.constant 0 : i32
    %c0_i32_1 = arith.constant 0 : i32
    return %c0_i32, %c0_i32_0 : i32, i32
  }
  func.func @transform_6(%arg0: i32) -> (i32, i32, i32) {
    %c0_i32 = arith.constant 0 : i32
    %c0_i32_0 = arith.constant 0 : i32
    %c0_i32_1 = arith.constant 0 : i32
    return %arg0, %c0_i32, %c0_i32_0 : i32, i32, i32
  }
}

</mosaic_0001>

<llo_original>
// kernel: tpu_custom_call.1
$region0: #{tpu_custom_call.1}
  #allocation0 [shape = 'u32[]', space=smem, size = 0x4, offset = 0x4, fixed_abs, tag = 'smem constant byte address 0x4 - core index']
  #allocation1 [shape = 'u32[144,128]{1,0:T(1,128)}', space=vmem, size = 0x12000, scoped, tag = 'internal scratch']
  %s0 = inlined_call_operand.vmem [shape: f32[2,8,4], index: 0, kind: input, shape index: {}]
  %s1 = inlined_call_operand.vmem [shape: s32[2,8,1], index: 1, kind: input, shape index: {}]
  %s2 = inlined_call_operand.vmem [shape: f32[2,1,1], index: 2, kind: input, shape index: {}]
  %s3 = inlined_call_operand.vmem [shape: f32[2,1,8], index: 3, kind: input, shape index: {}]
  %s4 = inlined_call_operand.vmem [shape: s32[2,1,1], index: 4, kind: input, shape index: {}]
  %s5 = inlined_call_operand.vmem [shape: f32[1,8], index: 5, kind: input, shape index: {}]
  %s6 = inlined_call_operand.hbm [shape: f32[2,1,128], index: 6, kind: output, shape index: {}]
  %s7 = sld [smem:[#allocation0]]
  $region57: #{tpu_custom_call.1} parent=0
    _
  %s9 = ssub.s32 1, %s7
  %s10 = scalar_select 0, %s9, %s7
  $region1: #{tpu_custom_call.1} parent=0
    #allocation2 [shape = 'u8[1024]{0}', space=vmem, size = 0x400, scoped, tag = 'output window, operand 0']
    #allocation3 [shape = 's32[2]{0}', space=sflag, size = 0x8, scoped, tag = 'scoped memory for tpu_custom_call.1']
    %11 = vsyncpa [#allocation3], 0
    %s12 = scalar_lea.sflag [#allocation3], 1
    %13 = vsyncpa %s12, 0
    loop: start=0, step=1, limit=4
    $region2: #{tpu_custom_call.1} parent=1 // loop_pre_header
      _
    $region3: #{tpu_custom_call.1} parent=1 // loop_header
      %s15 = sphi 0, %s19
      %p16 = scmp.ge.s32.totalorder %s15, 4
      %s25 = sphi 0, %s27
      %s28 = sphi 0, %s25
      %s29 = sphi 0, %s28
      %s45 = sphi 0, %s29
      %s51 = sphi 0, %s53
      %s54 = sphi 0, %s51
      %s55 = sphi 0, %s54
      %s71 = sphi 0, %s55
      %s77 = sphi 0, %s79
      %s80 = sphi 0, %s77
      %s81 = sphi 0, %s80
      %s97 = sphi 0, %s81
      %s103 = sphi 0, %s105
      %s106 = sphi 0, %s103
      %s107 = sphi 0, %s106
      %s123 = sphi 0, %s107
      %s129 = sphi 0, %s131
      %s132 = sphi 0, %s129
      %s133 = sphi 0, %s132
      %s149 = sphi 0, %s133
      %s153 = sphi 0, %s153
      %s155 = sphi 0, %s153
      %s156 = sphi 0, %s155
      %s170 = sphi 0, %s156
      %s176 = sphi 0, %s178
      %s179 = sphi 0, %s176
      %s180 = sphi 0, %s179
      %s196 = sphi 0, %s180
    $region4: #{tpu_custom_call.1} parent=1 // loop_header_branch
      %18 = sbr.rel (%p16) target = $region8
    $region5: #{tpu_custom_call.1} parent=1 // loop_body
      %s20 = ssub.s32 %s15, 1
      %s21 = ssub.s32 %s15, 2
      %s22 = sadd.s32 %s15, 1
      %s23 = ssub.s32 %s15, %s22
      %p24 = scmp.eq.s32.totalorder %s23, 0
      %s26 = sadd.s32 %s25, 1
      %s27 = scalar_select %p24, %s25, %s26
      %p30 = pneg %p24
      %p31 = scmp.eq.s32.totalorder %s15, 1
      %p32 = por %p30, %p31
      %p33 = scmp.ne.s32.totalorder %s25, %s28
      %p34 = scmp.eq.s32.totalorder %s15, 0
      %p35 = por %p33, %p34
      %p36 = scmp.ne.s32.totalorder %s25, %s28
      %p37 = scmp.eq.s32.totalorder %s20, 1
      %p38 = por %p36, %p37
      %p39 = scmp.ne.s32.totalorder %s28, %s29
      %p40 = scmp.eq.s32.totalorder %s20, 0
      %p41 = por %p39, %p40
      %p42 = scmp.ne.s32.totalorder %s28, %s29
      %p43 = scmp.eq.s32.totalorder %s21, 1
      %p44 = por %p42, %p43
      %p46 = scmp.ne.s32.totalorder %s29, %s45
      %p47 = scmp.eq.s32.totalorder %s21, 0
      %p48 = por %p46, %p47
      %s49 = ssub.s32 %s15, %s22
      %p50 = scmp.eq.s32.totalorder %s49, 0
      %s52 = sadd.s32 %s51, 1
      %s53 = scalar_select %p50, %s51, %s52
      %p56 = pneg %p50
      %p57 = scmp.eq.s32.totalorder %s15, 1
      %p58 = por %p56, %p57
      %p59 = scmp.ne.s32.totalorder %s51, %s54
      %p60 = scmp.eq.s32.totalorder %s15, 0
      %p61 = por %p59, %p60
      %p62 = scmp.ne.s32.totalorder %s51, %s54
      %p63 = scmp.eq.s32.totalorder %s20, 1
      %p64 = por %p62, %p63
      %p65 = scmp.ne.s32.totalorder %s54, %s55
      %p66 = scmp.eq.s32.totalorder %s20, 0
      %p67 = por %p65, %p66
      %p68 = scmp.ne.s32.totalorder %s54, %s55
      %p69 = scmp.eq.s32.totalorder %s21, 1
      %p70 = por %p68, %p69
      %p72 = scmp.ne.s32.totalorder %s55, %s71
      %p73 = scmp.eq.s32.totalorder %s21, 0
      %p74 = por %p72, %p73
      %s75 = ssub.s32 %s15, %s22
      %p76 = scmp.eq.s32.totalorder %s75, 0
      %s78 = sadd.s32 %s77, 1
      %s79 = scalar_select %p76, %s77, %s78
      %p82 = pneg %p76
      %p83 = scmp.eq.s32.totalorder %s15, 1
      %p84 = por %p82, %p83
      %p85 = scmp.ne.s32.totalorder %s77, %s80
      %p86 = scmp.eq.s32.totalorder %s15, 0
      %p87 = por %p85, %p86
      %p88 = scmp.ne.s32.totalorder %s77, %s80
      %p89 = scmp.eq.s32.totalorder %s20, 1
      %p90 = por %p88, %p89
      %p91 = scmp.ne.s32.totalorder %s80, %s81
      %p92 = scmp.eq.s32.totalorder %s20, 0
      %p93 = por %p91, %p92
      %p94 = scmp.ne.s32.totalorder %s80, %s81
      %p95 = scmp.eq.s32.totalorder %s21, 1
      %p96 = por %p94, %p95
      %p98 = scmp.ne.s32.totalorder %s81, %s97
      %p99 = scmp.eq.s32.totalorder %s21, 0
      %p100 = por %p98, %p99
      %s101 = ssub.s32 %s15, %s22
      %p102 = scmp.eq.s32.totalorder %s101, 0
      %s104 = sadd.s32 %s103, 1
      %s105 = scalar_select %p102, %s103, %s104
      %p108 = pneg %p102
      %p109 = scmp.eq.s32.totalorder %s15, 1
      %p110 = por %p108, %p109
      %p111 = scmp.ne.s32.totalorder %s103, %s106
      %p112 = scmp.eq.s32.totalorder %s15, 0
      %p113 = por %p111, %p112
      %p114 = scmp.ne.s32.totalorder %s103, %s106
      %p115 = scmp.eq.s32.totalorder %s20, 1
      %p116 = por %p114, %p115
      %p117 = scmp.ne.s32.totalorder %s106, %s107
      %p118 = scmp.eq.s32.totalorder %s20, 0
      %p119 = por %p117, %p118
      %p120 = scmp.ne.s32.totalorder %s106, %s107
      %p121 = scmp.eq.s32.totalorder %s21, 1
      %p122 = por %p120, %p121
      %p124 = scmp.ne.s32.totalorder %s107, %s123
      %p125 = scmp.eq.s32.totalorder %s21, 0
      %p126 = por %p124, %p125
      %s127 = ssub.s32 %s15, %s22
      %p128 = scmp.eq.s32.totalorder %s127, 0
      %s130 = sadd.s32 %s129, 1
      %s131 = scalar_select %p128, %s129, %s130
      %p134 = pneg %p128
      %p135 = scmp.eq.s32.totalorder %s15, 1
      %p136 = por %p134, %p135
      %p137 = scmp.ne.s32.totalorder %s129, %s132
      %p138 = scmp.eq.s32.totalorder %s15, 0
      %p139 = por %p137, %p138
      %p140 = scmp.ne.s32.totalorder %s129, %s132
      %p141 = scmp.eq.s32.totalorder %s20, 1
      %p142 = por %p140, %p141
      %p143 = scmp.ne.s32.totalorder %s132, %s133
      %p144 = scmp.eq.s32.totalorder %s20, 0
      %p145 = por %p143, %p144
      %p146 = scmp.ne.s32.totalorder %s132, %s133
      %p147 = scmp.eq.s32.totalorder %s21, 1
      %p148 = por %p146, %p147
      %p150 = scmp.ne.s32.totalorder %s133, %s149
      %p151 = scmp.eq.s32.totalorder %s21, 0
      %p152 = por %p150, %p151
      %s154 = sadd.s32 %s153, 1
      %p157 = scmp.eq.s32.totalorder %s15, 1
      %p158 = scmp.ne.s32.totalorder %s153, %s155
      %p159 = scmp.eq.s32.totalorder %s15, 0
      %p160 = por %p158, %p159
      %p161 = scmp.ne.s32.totalorder %s153, %s155
      %p162 = scmp.eq.s32.totalorder %s20, 1
      %p163 = por %p161, %p162
      %p164 = scmp.ne.s32.totalorder %s155, %s156
      %p165 = scmp.eq.s32.totalorder %s20, 0
      %p166 = por %p164, %p165
      %p167 = scmp.ne.s32.totalorder %s155, %s156
      %p168 = scmp.eq.s32.totalorder %s21, 1
      %p169 = por %p167, %p168
      %p171 = scmp.ne.s32.totalorder %s156, %s170
      %p172 = scmp.eq.s32.totalorder %s21, 0
      %p173 = por %p171, %p172
      %s174 = ssub.s32 %s15, %s22
      %p175 = scmp.eq.s32.totalorder %s174, 0
      %s177 = sadd.s32 %s176, 1
      %s178 = scalar_select %p175, %s176, %s177
      %p181 = pneg %p175
      %p182 = scmp.eq.s32.totalorder %s15, 1
      %p183 = por %p181, %p182
      %p184 = scmp.ne.s32.totalorder %s176, %s179
      %p185 = scmp.eq.s32.totalorder %s15, 0
      %p186 = por %p184, %p185
      %p187 = scmp.ne.s32.totalorder %s176, %s179
      %p188 = scmp.eq.s32.totalorder %s20, 1
      %p189 = por %p187, %p188
      %p190 = scmp.ne.s32.totalorder %s179, %s180
      %p191 = scmp.eq.s32.totalorder %s20, 0
      %p192 = por %p190, %p191
      %p193 = scmp.ne.s32.totalorder %s179, %s180
      %p194 = scmp.eq.s32.totalorder %s21, 1
      %p195 = por %p193, %p194
      %p197 = scmp.ne.s32.totalorder %s180, %s196
      %p198 = scmp.eq.s32.totalorder %s21, 0
      %p199 = por %p197, %p198
      %p200 = scmp.le.s32.totalorder 1, %s15
      %p201 = scmp.lt.s32.totalorder %s15, 3
      %p202 = pnand %p200, %p201
      %p203 = pneg %p202
      // Predicated region
      $region9: #{tpu_custom_call.1} parent=5 // pred_check
        _
      $region10: #{tpu_custom_call.1} parent=5 // pred_check_branch
        %205 = sbr.rel (%p202) target = $region12
      $region11: #{tpu_custom_call.1} parent=5 // pred_region
        %s206 = ssub.s32 %s15, 1
        // Predicated region
        $region13: #{tpu_custom_call.1} parent=11 // pred_check
          %p207 = pneg %p166
        $region14: #{tpu_custom_call.1} parent=11 // pred_check_branch
          %209 = sbr.rel (%p207) target = $region16
        $region15: #{tpu_custom_call.1} parent=11 // pred_region
          _
        $region16: #{tpu_custom_call.1} parent=11 // pred_fallthru
          _
      $region12: #{tpu_custom_call.1} parent=5 // pred_fallthru
        _
      %p210 = scmp.lt.s32.totalorder %s15, 2
      // Predicated region
      $region17: #{tpu_custom_call.1} parent=5 // pred_check
        %p211 = pneg %p210
      $region18: #{tpu_custom_call.1} parent=5 // pred_check_branch
        %213 = sbr.rel (%p211) target = $region20
      $region19: #{tpu_custom_call.1} parent=5 // pred_region
        // Predicated region
        $region21: #{tpu_custom_call.1} parent=19 // pred_check
          %p214 = pneg %p35
        $region22: #{tpu_custom_call.1} parent=19 // pred_check_branch
          %216 = sbr.rel (%p214) target = $region24
        $region23: #{tpu_custom_call.1} parent=19 // pred_region
          %p217 = scmp.lt.s32.totalorder %s15, 1
          %s218 = scalar_select %p217, %s15, 1
          %s219 = smul.addr %s218, 8
          %s220 = scalar_lea.vmem %s0, %s219
        $region24: #{tpu_custom_call.1} parent=19 // pred_fallthru
          _
        // Predicated region
        $region25: #{tpu_custom_call.1} parent=19 // pred_check
          %p221 = pneg %p61
        $region26: #{tpu_custom_call.1} parent=19 // pred_check_branch
          %223 = sbr.rel (%p221) target = $region28
        $region27: #{tpu_custom_call.1} parent=19 // pred_region
          %p224 = scmp.lt.s32.totalorder %s15, 1
          %s225 = scalar_select %p224, %s15, 1
          %s226 = smul.addr %s225, 8
          %s227 = scalar_lea.vmem %s1, %s226
        $region28: #{tpu_custom_call.1} parent=19 // pred_fallthru
          _
        // Predicated region
        $region29: #{tpu_custom_call.1} parent=19 // pred_check
          %p228 = pneg %p87
        $region30: #{tpu_custom_call.1} parent=19 // pred_check_branch
          %230 = sbr.rel (%p228) target = $region32
        $region31: #{tpu_custom_call.1} parent=19 // pred_region
          %p231 = scmp.lt.s32.totalorder %s15, 1
          %s232 = scalar_select %p231, %s15, 1
          %s233 = scalar_lea.vmem %s2, %s232
        $region32: #{tpu_custom_call.1} parent=19 // pred_fallthru
          _
        // Predicated region
        $region33: #{tpu_custom_call.1} parent=19 // pred_check
          %p234 = pneg %p113
        $region34: #{tpu_custom_call.1} parent=19 // pred_check_branch
          %236 = sbr.rel (%p234) target = $region36
        $region35: #{tpu_custom_call.1} parent=19 // pred_region
          %p237 = scmp.lt.s32.totalorder %s15, 1
          %s238 = scalar_select %p237, %s15, 1
          %s239 = scalar_lea.vmem %s3, %s238
        $region36: #{tpu_custom_call.1} parent=19 // pred_fallthru
          _
        // Predicated region
        $region37: #{tpu_custom_call.1} parent=19 // pred_check
          %p240 = pneg %p139
        $region38: #{tpu_custom_call.1} parent=19 // pred_check_branch
          %242 = sbr.rel (%p240) target = $region40
        $region39: #{tpu_custom_call.1} parent=19 // pred_region
          %p243 = scmp.lt.s32.totalorder %s15, 1
          %s244 = scalar_select %p243, %s15, 1
          %s245 = scalar_lea.vmem %s4, %s244
        $region40: #{tpu_custom_call.1} parent=19 // pred_fallthru
          _
      $region20: #{tpu_custom_call.1} parent=5 // pred_fallthru
        _
      %p246 = scmp.le.s32.totalorder 1, %s15
      %p247 = scmp.lt.s32.totalorder %s15, 3
      %p248 = pnand %p246, %p247
      %p249 = pneg %p248
      // Predicated region
      $region41: #{tpu_custom_call.1} parent=5 // pred_check
        _
      $region42: #{tpu_custom_call.1} parent=5 // pred_check_branch
        %251 = sbr.rel (%p248) target = $region44
      $region43: #{tpu_custom_call.1} parent=5 // pred_region
        %s252 = ssub.s32 %s15, 1
        %p253 = scmp.lt.s32.totalorder %s20, 1
        %s254 = scalar_select %p253, %s20, 1
        %s255 = smul.addr %s254, 8
        %s256 = scalar_lea.vmem %s0, %s255
        %p257 = pneg %p41
        %p258 = pneg %p38
        %p259 = scmp.lt.s32.totalorder %s20, 1
        %s260 = scalar_select %p259, %s20, 1
        %s261 = smul.addr %s260, 8
        %s262 = scalar_lea.vmem %s1, %s261
        %p263 = pneg %p67
        %p264 = pneg %p64
        %p265 = scmp.lt.s32.totalorder %s20, 1
        %s266 = scalar_select %p265, %s20, 1
        %s267 = scalar_lea.vmem %s2, %s266
        %p268 = pneg %p93
        %p269 = pneg %p90
        %p270 = scmp.lt.s32.totalorder %s20, 1
        %s271 = scalar_select %p270, %s20, 1
        %s272 = scalar_lea.vmem %s3, %s271
        %p273 = pneg %p119
        %p274 = pneg %p116
        %p275 = scmp.lt.s32.totalorder %s20, 1
        %s276 = scalar_select %p275, %s20, 1
        %s277 = scalar_lea.vmem %s4, %s276
        %p278 = pneg %p145
        %p279 = pneg %p142
        %p280 = pneg %p166
        %p281 = pneg %p163
        %p282 = pneg %p192
        %p283 = pneg %p189
        %s284 = sand.u32 %s179, 1
        %s285 = scalar_lea.sflag [#allocation3], %s284
        %s286 = sand.u32 %s179, 1
        %s287 = scalar_lea.vmem [#allocation2], %s286
        %p288 = scmp.lt.s32.totalorder %s20, 1
        %s289 = scalar_select %p288, %s20, 1
        %s290 = smul.addr %s289, 8
        %s291 = scalar_lea.vmem %s0, %s290
        %p292 = scmp.lt.s32.totalorder %s20, 1
        %s293 = scalar_select %p292, %s20, 1
        %s294 = smul.addr %s293, 8
        %s295 = scalar_lea.vmem %s1, %s294
        %p296 = scmp.lt.s32.totalorder %s20, 1
        %s297 = scalar_select %p296, %s20, 1
        %s298 = scalar_lea.vmem %s2, %s297
        %p299 = scmp.lt.s32.totalorder %s20, 1
        %s300 = scalar_select %p299, %s20, 1
        %s301 = scalar_lea.vmem %s3, %s300
        %p302 = scmp.lt.s32.totalorder %s20, 1
        %s303 = scalar_select %p302, %s20, 1
        %s304 = scalar_lea.vmem %s4, %s303
        %v305 = vld [vmem:[%s291] sm:$0xff]
        %v306 = vld [vmem:[%s295] sm:$0xff]
        %v307 = vlaneseq
        %v308 = vand.u32 %v307, 127
        %309 = vset.pattern.permute.xlu0 0
        %310 = vperm.xlu0 %309, %v306
        %v311 = vpop.permute.xlu0 %310
        %vm312 = vcmp.eq.s32.totalorder %v308, %v311
        %v313 = vsel %vm312, 1, 0
        %v314 = vcvt.s32.f32 %v313
        %v315 = vand.u32 2147483647, %v305
        %v316 = vsub.f32 0.0, %v315
        %v317 = vmul.f32 %v316, 1.442695
        %v318 = vpow.pop %v317
        %v319 = vadd.f32 %v318, 1.0
        %v320 = vrcp.pop %v319
        %vm321 = vcmp.ge.f32.partialorder %v305, 0.0
        %v322 = vmul.f32 %v318, %v320
        %v323 = vsel %vm321, %v320, %v322
        %v324 = vmax.f32 %v305, 0.0
        %v325 = vmul.f32 %v305, %v314
        %v326 = vsub.f32 %v324, %v325
        %v327 = vadd.f32 %v318, 1.0
        %v328 = vlog2.pop %v327
        %v329 = vmul.f32 %v328, 0.6931472
        %v330 = vmul.f32 -0.5, %v318
        %v331 = vadd.f32 %v330, 1.0
        %v332 = vmul.f32 %v331, %v318
        %v333 = vand.u32 2147483647, %v318
        %vm334 = vcmp.lt.f32.partialorder %v333, 0.0004427343
        %v335 = vsel %vm334, %v332, %v329
        %v336 = vadd.f32 %v326, %v335
        %v337 = vmul.f32 %v323, %v314
        %v338 = vsub.f32 1.0, %v323
        %v339 = vsub.f32 1.0, %v314
        %v340 = vmul.f32 %v338, %v339
        %v341 = vadd.f32 %v337, %v340
        %v342 = vsub.f32 1.0, %v341
        %v343 = vmul.f32 %v342, %v342
        %v344 = vmul.f32 %v336, %v343
        %v345 = vmul.f32 %v314, 0.25
        %v346 = vmul.f32 %v339, 0.75
        %v347 = vadd.f32 %v345, %v346
        %v348 = vmul.f32 %v347, %v344
        %vm349 = vcmask 31744
        %v350 = vsel %vm349, %v348, 0.0
        %351 = vadd.xlane.f32.xlu0 %v350
        %v352 = vpop.xlane.xlu0 %351
        %v353 = vrot.slane %v352, 4
        %v354 = vadd.f32 %v352, %v353
        %v355 = vrot.slane %v354, 2
        %v356 = vadd.f32 %v354, %v355
        %v357 = vrot.slane %v356, 1
        %v358 = vadd.f32 %v356, %v357
        %s359 = vtos %v358
        %vm360 = vcmp.lt.s32.totalorder %v308, 3
        %v361 = vsel %vm360, %v305, -inf
        %v362 = vsel %vm349, %v361, -inf
        %363 = vmax.xlane.f32.xlu0 %v362
        %v364 = vpop.xlane.xlu0 %363
        %vm365 = vcmp.eq.s32.totalorder %v308, 3
        %v366 = vsel %vm365, %v305, -inf
        %v367 = vsel %vm349, %v366, -inf
        %368 = vmax.xlane.f32.xlu0 %v367
        %v369 = vpop.xlane.xlu0 %368
        %vm370 = vcmp.ge.f32.partialorder %v364, %v369
        %v371 = vsel %vm370, 1, 0
        %v372 = vcvt.s32.f32 %v371
        %vm373 = vcmask 7168
        %v374 = vsel %vm373, %v372, 0.0
        %375 = vadd.xlane.f32.xlu0 %v374
        %v376 = vpop.xlane.xlu0 %375
        %v377 = vrot.slane %v376, 4
        %v378 = vadd.f32 %v376, %v377
        %v379 = vrot.slane %v378, 2
        %v380 = vadd.f32 %v378, %v379
        %v381 = vrot.slane %v380, 1
        %v382 = vadd.f32 %v380, %v381
        %s383 = vtos %v382
        %v384 = vld [vmem:[%s298] sm:$0x1]
        %v385 = vadd.f32 %v384, 0.0
        %s386 = vtos %v385
        %s387 = ssub.f32 %s383, %s386
        %s388 = sand.u32 2147483647, %s387
        %v389 = vld [vmem:[%s301] sm:$0x1]
        %v390 = vld [vmem:[%s5] sm:$0x1]
        %v391 = vld [vmem:[%s304] sm:$0x1]
        %392 = vset.pattern.permute.xlu0 0
        %393 = vperm.xlu0 %392, %v391
        %v394 = vpop.permute.xlu0 %393
        %v395 = vlaneseq
        %v396 = vshrl.u32 %v395, 7
        %v397 = vsub.s32 0, %v396
        %v398 = vrot.slane %v394, %v397
        %vm399 = vcmp.eq.s32.totalorder %v308, %v398
        %v400 = vsel %vm399, 1, 0
        %v401 = vcvt.s32.f32 %v400
        %v402 = vcvt.s32.f32 %v308
        %v403 = vcvt.s32.f32 %v391
        %405 = vset.pattern.permute.xlu0 0
        %406 = vperm.xlu0 %405, %v403
        %v407 = vpop.permute.xlu0 %406
        %v409 = vlaneseq
        %v410 = vshrl.u32 %v409, 7
        %v411 = vsub.s32 0, %v410
        %v412 = vrot.slane %v407, %v411
        %v413 = vsub.f32 %v402, %v412
        %v414 = vmul.f32 %v413, %v413
        %v415 = vsub.f32 0.0, %v414
        %v416 = vrcp.pop 8.0
        %v417 = vmul.f32 %v415, %v416
        %v418 = vmul.f32 %v417, 1.442695
        %v419 = vpow.pop %v418
        %v420 = vmax.f32 %v389, 0.0
        %v421 = vmul.f32 %v389, %v401
        %v422 = vsub.f32 %v420, %v421
        %v423 = vand.u32 2147483647, %v389
        %v424 = vsub.f32 0.0, %v423
        %v425 = vmul.f32 %v424, 1.442695
        %v426 = vpow.pop %v425
        %v427 = vadd.f32 %v426, 1.0
        %v428 = vlog2.pop %v427
        %v429 = vmul.f32 %v428, 0.6931472
        %v430 = vmul.f32 -0.5, %v426
        %v431 = vadd.f32 %v430, 1.0
        %v432 = vmul.f32 %v431, %v426
        %v433 = vand.u32 2147483647, %v426
        %vm434 = vcmp.lt.f32.partialorder %v433, 0.0004427343
        %v435 = vsel %vm434, %v432, %v429
        %v436 = vadd.f32 %v422, %v435
        %v437 = vsub.f32 1.0, %v390
        %v438 = vmul.f32 %v436, %v437
        %v439 = vsub.f32 1.0, %v419
        %v440 = vsub.f32 1.0, %v401
        %v441 = vmul.f32 %v439, %v440
        %v442 = vadd.f32 %v401, %v441
        %v443 = vmul.f32 %v438, %v442
        %vm444 = vcmask 57344
        %v445 = vsel %vm444, %v443, 0.0
        %446 = vadd.xlane.f32.xlu0 %v445
        %v447 = vpop.xlane.xlu0 %446
        %v448 = vrot.slane %v447, 4
        %v449 = vadd.f32 %v447, %v448
        %v450 = vrot.slane %v449, 2
        %v451 = vadd.f32 %v449, %v450
        %v452 = vrot.slane %v451, 1
        %v453 = vadd.f32 %v451, %v452
        %s454 = vtos %v453
        %vm455 = vcmp.eq.s32.totalorder %v308, 0
        %v456 = vstv %s359
        %v457 = vsel %vm455, %v456, 0.0
        %vm458 = vcmp.eq.s32.totalorder %v308, 1
        %v459 = vstv %s388
        %v460 = vsel %vm458, %v459, %v457
        %vm461 = vcmp.eq.s32.totalorder %v308, 2
        %v462 = vstv %s454
        %v463 = vsel %vm461, %v462, %v460
        %464 = vst [vmem:[%s287] sm:$0x1] %v463
        %s465 = sand.u32 %s179, 1
        %s466 = scalar_lea.sflag [#allocation3], %s465
        %s467 = sand.u32 %s179, 1
        %s468 = scalar_lea.vmem [#allocation2], %s467
        // Predicated region
        $region45: #{tpu_custom_call.1} parent=43 // pred_check
          %p469 = pneg %p189
        $region46: #{tpu_custom_call.1} parent=43 // pred_check_branch
          %471 = sbr.rel (%p469) target = $region48
        $region47: #{tpu_custom_call.1} parent=43 // pred_region
          %s473 = ssub.s32 16, 16
          %474 = vsyncadd %s466, %s473
          %s475 = smul.addr %s20, 16
          %s476 = scalar_lea.hbm %s6, %s475
          %s478 = sshll.u32 %s468, 4
          %s479 = int_to_ptr.vmem [resolvable:$true] %s478
          %481 = dma.vmem_to_hbm [thread:$0]  %s479, 16, %s476, %s466
        $region48: #{tpu_custom_call.1} parent=43 // pred_fallthru
          _
      $region44: #{tpu_custom_call.1} parent=5 // pred_fallthru
        _
      %p482 = scmp.le.s32.totalorder 2, %s15
      // Predicated region
      $region49: #{tpu_custom_call.1} parent=5 // pred_check
        %p483 = pneg %p482
      $region50: #{tpu_custom_call.1} parent=5 // pred_check_branch
        %485 = sbr.rel (%p483) target = $region52
      $region51: #{tpu_custom_call.1} parent=5 // pred_region
        %s486 = ssub.s32 %s15, 2
        // Predicated region
        $region53: #{tpu_custom_call.1} parent=51 // pred_check
          %p487 = pneg %p195
        $region54: #{tpu_custom_call.1} parent=51 // pred_check_branch
          %489 = sbr.rel (%p487) target = $region56
        $region55: #{tpu_custom_call.1} parent=51 // pred_region
          %s490 = sand.u32 %s180, 1
          %s491 = scalar_lea.sflag [#allocation3], %s490
          %s492 = sand.u32 %s180, 1
          %s493 = scalar_lea.vmem [#allocation2], %s492
          %494 = dma.done %s491, 16
        $region56: #{tpu_custom_call.1} parent=51 // pred_fallthru
          _
      $region52: #{tpu_custom_call.1} parent=5 // pred_fallthru
        _
    $region6: #{tpu_custom_call.1} parent=1 // loop_footer
      %s19 = sadd.s32 1, %s15
    $region7: #{tpu_custom_call.1} parent=1 // loop_footer_branch
      %14 = sbr.rel target = $region3
    $region8: #{tpu_custom_call.1} parent=1 // loop_exit
      _
    %495 = vsyncpa [#allocation3], 1
    %s496 = scalar_lea.sflag [#allocation3], 1
    %497 = vsyncpa %s496, 1

</llo_original>
